<compile_context>
chip_gen: v5e
topology: v5e:2x2
jax: 0.10.0
libtpu: 0.0.40
codegen_flags: <defaults>
</compile_context>

<pallas_src>
from functools import partial

import jax
import jax.numpy as jnp
from jax import lax
from jax.experimental import pallas as pl
from jax.experimental.pallas import tpu as pltpu


def single_layer_kernel(x_ref, w_ref, scale_ref, bias_ref, mask_ref,
                        o_ref, slab_ref, *, NB, W, HWP, C, G):
    # x_ref:     (NB, C, HWP)     input block, channel-major, padded H*W on lanes
    # w_ref:     (G, 9*C)         stacked conv weight (bf16), column block k = tap k
    # scale_ref: (C, 1)           folded BN scale = gamma / sqrt(var + eps)
    # bias_ref:  (C, 1)           folded BN bias  = beta - mean * scale
    # mask_ref:  (9, 1, HWP)      0/1 validity mask per tap (precomputed in wrapper)
    # o_ref:     (NB, C+G, HWP)   output block: rows [0:C] = x, rows [C:C+G] = conv
    # slab_ref:  (9*C, HWP) f32   VMEM scratch holding the stacked taps
    scale = scale_ref[...]                      # (C, 1) broadcasts over lanes
    bias = bias_ref[...]
    w = w_ref[...]                              # (G, 9*C) bf16
    mask = mask_ref[...]                        # (9, 1, HWP) f32

    # Static lane shifts; tap order k = (dh+1)*3 + (dw+1) matches the weight layout.
    shifts = [(-(dh * W + dw)) % HWP for dh in (-1, 0, 1) for dw in (-1, 0, 1)]

    def process(n):
        x = x_ref[n]                                      # (C, HWP)
        # Fused inference BN + ReLU on the VPU, kept in f32 (v5e: no bf16 VPU).
        y = jnp.maximum(x * scale + bias, 0.0)
        for k, s in enumerate(shifts):
            shifted = y if s == 0 else pltpu.roll(y, shift=s, axis=1)   # XLU slot
            slab_ref[k * C:(k + 1) * C, :] = mask[k] * shifted          # zero OOB taps
        # Single stacked contraction: (G, 9C) @ (9C, HWP) in bf16, f32 accumulate.
        slab = slab_ref[...].astype(jnp.bfloat16)
        conv = jnp.dot(w, slab, preferred_element_type=jnp.float32)     # (G, HWP)
        # Lane-dense stores (last dim HWP is a multiple of 128): full-width vst,
        # only sublane-masked at the C / C+G row boundary when C % 8 != 0.
        o_ref[n, 0:C, :] = x
        o_ref[n, C:C + G, :] = conv.astype(o_ref.dtype)

    if NB == 1:
        process(0)
    else:
        # No Python unrolling of the batch block (bounds live ranges / code size).
        def body(n, carry):
            process(n)
            return carry
        lax.fori_loop(0, NB, body, 0)


def single_layer_forward(x_nchw, conv_w, gamma, beta, running_mean, running_var,
                         dropout_rate=0.0, eps=1e-5, batch_block=None):
    N, C, H, W = x_nchw.shape
    G = conv_w.shape[0]
    HW = H * W
    # Keep the lane axis >= 128 and a multiple of 128 (unmasked vld/vst even for
    # small-spatial DenseNet stages such as 8x8 -> HW=64).
    HWP = max(128, ((HW + 127) // 128) * 128)

    # Free contiguous reshape: stay NCHW, fuse H and W onto the lane axis.
    x = x_nchw.reshape(N, C, HW)
    if HWP != HW:
        x = jnp.pad(x, ((0, 0), (0, 0), (0, HWP - HW)))

    # (G, C, 3, 3) -> (G, kh, kw, C) -> (G, 9*C): column block k = kh*3 + kw.
    w2 = jnp.transpose(conv_w, (0, 2, 3, 1)).reshape(G, 9 * C).astype(jnp.bfloat16)

    # Folded inference BatchNorm.
    scale = (gamma / jnp.sqrt(running_var + eps)).astype(jnp.float32)
    bias = (beta - running_mean * scale).astype(jnp.float32)
    scale2 = scale.reshape(C, 1)
    bias2 = bias.reshape(C, 1)

    # Per-tap validity masks hoisted out of the kernel (small resident VMEM input).
    p = jnp.arange(HWP, dtype=jnp.int32)
    h_idx, w_idx = p // W, p % W
    masks = []
    for dh in (-1, 0, 1):
        for dw in (-1, 0, 1):
            masks.append((p < HW)
                         & (h_idx + dh >= 0) & (h_idx + dh < H)
                         & (w_idx + dw >= 0) & (w_idx + dw < W))
    mask = jnp.stack(masks, axis=0).astype(jnp.float32).reshape(9, 1, HWP)

    itemsize = jnp.dtype(x.dtype).itemsize
    per_image = (C + (C + G)) * HWP * itemsize          # streamed in + out per image
    if batch_block is None:
        # Budget the per-step block so double-buffered streams fit comfortably in
        # scoped VMEM on every generation (v7x has 64 MiB physical), while keeping
        # the grid length >= 2 so pipelining and the v7x 2-TC megacore split engage.
        budget = 12 * 1024 * 1024
        bb = max(1, min(N, budget // max(per_image, 1)))
        while N % bb != 0:
            bb -= 1
        if N // bb < 2 and bb > 1:
            bb = max(1, bb // 2)
            while N % bb != 0:
                bb -= 1
        batch_block = bb
    assert N % batch_block == 0

    const_bytes = w2.size * 2 + scale2.size * 4 + bias2.size * 4 + mask.size * 4
    slab_bytes = 9 * C * HWP * 4
    needed = 2 * batch_block * per_image + 2 * const_bytes + slab_bytes + (2 << 20)
    # Raised above the 16/32 MiB defaults when blocks grow; capped at v7x physical.
    vmem_limit = int(min(64 << 20, max(32 << 20, needed)))

    kernel = partial(single_layer_kernel, NB=batch_block, W=W, HWP=HWP, C=C, G=G)

    out = pl.pallas_call(
        kernel,
        out_shape=jax.ShapeDtypeStruct((N, C + G, HWP), x.dtype),
        grid_spec=pltpu.PrefetchScalarGridSpec(
            num_scalar_prefetch=0,
            grid=(N // batch_block,),
            in_specs=[
                pl.BlockSpec((batch_block, C, HWP), lambda n: (n, 0, 0)),
                pl.BlockSpec((G, 9 * C), lambda n: (0, 0)),
                pl.BlockSpec((C, 1), lambda n: (0, 0)),
                pl.BlockSpec((C, 1), lambda n: (0, 0)),
                pl.BlockSpec((9, 1, HWP), lambda n: (0, 0, 0)),
            ],
            # TODO(synk): if xprof shows exposed DMA on long grids, add
            # pipeline_mode=pl.Buffered(3) to the x / out specs (VMEM permitting).
            out_specs=pl.BlockSpec((batch_block, C + G, HWP), lambda n: (n, 0, 0)),
            scratch_shapes=[pltpu.VMEM((9 * C, HWP), jnp.float32)],
        ),
        compiler_params=pltpu.CompilerParams(
            dimension_semantics=("parallel",),
            vmem_limit_bytes=vmem_limit,
        ),
    )(x, w2, scale2, bias2, mask)

    # dropout_rate handled as identity (eval mode).
    if HWP != HW:
        out = out[:, :, :HW]
    return out.reshape(N, C + G, H, W)


def reference_forward(x_nchw, conv_w, gamma, beta, running_mean, running_var,
                      eps=1e-5, mxu_dtype=None):
    scale = gamma / jnp.sqrt(running_var + eps)
    bias = beta - running_mean * scale
    y = jnp.maximum(x_nchw * scale[None, :, None, None] + bias[None, :, None, None], 0.0)
    w = conv_w
    if mxu_dtype is not None:
        # Round conv inputs to the kernel's MXU input precision (f32 accumulation).
        y = y.astype(mxu_dtype).astype(jnp.float32)
        w = w.astype(mxu_dtype).astype(jnp.float32)
    out = lax.conv_general_dilated(
        y, w, window_strides=(1, 1), padding=((1, 1), (1, 1)),
        dimension_numbers=("NCHW", "OIHW", "NCHW"))
    return jnp.concatenate([x_nchw, out], axis=1)


if __name__ == "__main__":
    # Small shapes consistent with the module: batch=2, nChannels=4, growthRate=8, 16x16
    N, C, G, H, W = 2, 4, 8, 16, 16

    key = jax.random.PRNGKey(0)
    k_x, k_w, k_g, k_b, k_m, k_v = jax.random.split(key, 6)

    x = jax.random.normal(k_x, (N, C, H, W), dtype=jnp.float32)
    conv_w = jax.random.normal(k_w, (G, C, 3, 3), dtype=jnp.float32) * 0.1
    gamma = 1.0 + 0.1 * jax.random.normal(k_g, (C,), dtype=jnp.float32)
    beta = 0.1 * jax.random.normal(k_b, (C,), dtype=jnp.float32)
    running_mean = 0.1 * jax.random.normal(k_m, (C,), dtype=jnp.float32)
    running_var = 1.0 + 0.1 * jax.random.uniform(k_v, (C,), dtype=jnp.float32)

    out = single_layer_forward(x, conv_w, gamma, beta, running_mean, running_var,
                               dropout_rate=0.0)
    out = jax.block_until_ready(out)
    assert out.shape == (N, C + G, H, W), out.shape

    # The x passthrough rows of the concat must be exact.
    assert jnp.array_equal(out[:, :C], x), "x passthrough mismatch"

    # Tight check vs an XLA conv whose inputs are rounded to the kernel's bf16 MXU
    # input precision (f32 accumulate), then a loose check vs the full-f32 reference.
    ref_bf16 = reference_forward(x, conv_w, gamma, beta, running_mean, running_var,
                                 mxu_dtype=jnp.bfloat16)
    assert jnp.allclose(out, ref_bf16, atol=1e-2, rtol=1e-2), "mismatch vs bf16 reference"
    ref_f32 = reference_forward(x, conv_w, gamma, beta, running_mean, running_var)
    assert jnp.allclose(out, ref_f32, atol=5e-2, rtol=5e-2), "mismatch vs f32 reference"

    print("KERNEL_OK")
</pallas_src>

<mosaic_0001>
module attributes {stable_mosaic.version = 11 : i64} {
  func.func @single_layer_kernel(%arg0: i32, %arg1: memref<1x4x256xf32, #tpu.memory_space<vmem>>, %arg2: memref<8x36xbf16, #tpu.memory_space<vmem>>, %arg3: memref<4x1xf32, #tpu.memory_space<vmem>>, %arg4: memref<4x1xf32, #tpu.memory_space<vmem>>, %arg5: memref<9x1x256xf32, #tpu.memory_space<vmem>>, %arg6: memref<1x12x256xf32, #tpu.memory_space<vmem>>, %arg7: memref<36x256xf32, #tpu.memory_space<vmem>>) attributes {dimension_semantics = [#tpu.dimension_semantics<parallel>], iteration_bounds = array<i64: 2>, scalar_prefetch = 0 : i64, scratch_operands = 1 : i64, tpu.core_type = #tpu.core_type<tc>, window_params = [{transform_indices = @transform_0, window_bounds = array<i64: 1, 4, 256>}, {pipeline_mode = #tpu.pipeline_mode<synchronous>, transform_indices = @transform_1, window_bounds = array<i64: 8, 36>}, {pipeline_mode = #tpu.pipeline_mode<synchronous>, transform_indices = @transform_2, window_bounds = array<i64: 4, 1>}, {pipeline_mode = #tpu.pipeline_mode<synchronous>, transform_indices = @transform_3, window_bounds = array<i64: 4, 1>}, {pipeline_mode = #tpu.pipeline_mode<synchronous>, transform_indices = @transform_4, window_bounds = array<i64: 9, 1, 256>}, {transform_indices = @transform_5, window_bounds = array<i64: 1, 12, 256>}]} {
    %c0 = arith.constant 0 : index
    %c0_0 = arith.constant 0 : index
    %0 = vector.load %arg3[%c0, %c0_0] : memref<4x1xf32, #tpu.memory_space<vmem>>, vector<4x1xf32>
    %c0_1 = arith.constant 0 : index
    %c0_2 = arith.constant 0 : index
    %1 = vector.load %arg4[%c0_1, %c0_2] : memref<4x1xf32, #tpu.memory_space<vmem>>, vector<4x1xf32>
    %c0_3 = arith.constant 0 : index
    %c0_4 = arith.constant 0 : index
    %2 = vector.load %arg2[%c0_3, %c0_4] : memref<8x36xbf16, #tpu.memory_space<vmem>>, vector<8x36xbf16>
    %c0_5 = arith.constant 0 : index
    %c0_6 = arith.constant 0 : index
    %c0_7 = arith.constant 0 : index
    %3 = vector.load %arg5[%c0_5, %c0_6, %c0_7] : memref<9x1x256xf32, #tpu.memory_space<vmem>>, vector<9x1x256xf32>
    %c0_8 = arith.constant 0 : index
    %c0_9 = arith.constant 0 : index
    %c0_10 = arith.constant 0 : index
    %4 = vector.load %arg1[%c0_8, %c0_9, %c0_10] : memref<1x4x256xf32, #tpu.memory_space<vmem>>, vector<1x4x256xf32>
    %5 = vector.shape_cast %4 : vector<1x4x256xf32> to vector<4x256xf32>
    %6 = vector.broadcast %0 : vector<4x1xf32> to vector<4x256xf32>
    %7 = arith.mulf %5, %6 : vector<4x256xf32>
    %8 = vector.broadcast %1 : vector<4x1xf32> to vector<4x256xf32>
    %9 = arith.addf %7, %8 : vector<4x256xf32>
    %cst = arith.constant 0.000000e+00 : f32
    %10 = vector.broadcast %cst : f32 to vector<4x256xf32>
    %11 = arith.maximumf %9, %10 : vector<4x256xf32>
    %c17_i32 = arith.constant 17 : i32
    %12 = tpu.dynamic_rotate %11 by %c17_i32 dim 1 : vector<4x256xf32>, i32 -> vector<4x256xf32>
    %13 = vector.extract_strided_slice %3 {offsets = [0, 0, 0], sizes = [1, 1, 256], strides = [1, 1, 1]} : vector<9x1x256xf32> to vector<1x1x256xf32>
    %14 = vector.shape_cast %13 : vector<1x1x256xf32> to vector<1x256xf32>
    %15 = vector.broadcast %14 : vector<1x256xf32> to vector<4x256xf32>
    %16 = arith.mulf %15, %12 : vector<4x256xf32>
    %c0_11 = arith.constant 0 : index
    %c0_12 = arith.constant 0 : index
    %17 = vector.load %arg7[%c0_11, %c0_12] : memref<36x256xf32, #tpu.memory_space<vmem>>, vector<4x256xf32>
    tpu.vector_store %arg7[%c0_11, %c0_12], %16 {strides = array<i32>} : memref<36x256xf32, #tpu.memory_space<vmem>>, vector<4x256xf32>,
    %c16_i32 = arith.constant 16 : i32
    %18 = tpu.dynamic_rotate %11 by %c16_i32 dim 1 : vector<4x256xf32>, i32 -> vector<4x256xf32>
    %19 = vector.extract_strided_slice %3 {offsets = [1, 0, 0], sizes = [1, 1, 256], strides = [1, 1, 1]} : vector<9x1x256xf32> to vector<1x1x256xf32>
    %20 = vector.shape_cast %19 : vector<1x1x256xf32> to vector<1x256xf32>
    %21 = vector.broadcast %20 : vector<1x256xf32> to vector<4x256xf32>
    %22 = arith.mulf %21, %18 : vector<4x256xf32>
    %c4 = arith.constant 4 : index
    %c0_13 = arith.constant 0 : index
    %23 = vector.load %arg7[%c4, %c0_13] : memref<36x256xf32, #tpu.memory_space<vmem>>, vector<4x256xf32>
    tpu.vector_store %arg7[%c4, %c0_13], %22 {strides = array<i32>} : memref<36x256xf32, #tpu.memory_space<vmem>>, vector<4x256xf32>,
    %c15_i32 = arith.constant 15 : i32
    %24 = tpu.dynamic_rotate %11 by %c15_i32 dim 1 : vector<4x256xf32>, i32 -> vector<4x256xf32>
    %25 = vector.extract_strided_slice %3 {offsets = [2, 0, 0], sizes = [1, 1, 256], strides = [1, 1, 1]} : vector<9x1x256xf32> to vector<1x1x256xf32>
    %26 = vector.shape_cast %25 : vector<1x1x256xf32> to vector<1x256xf32>
    %27 = vector.broadcast %26 : vector<1x256xf32> to vector<4x256xf32>
    %28 = arith.mulf %27, %24 : vector<4x256xf32>
    %c8 = arith.constant 8 : index
    %c0_14 = arith.constant 0 : index
    %29 = vector.load %arg7[%c8, %c0_14] : memref<36x256xf32, #tpu.memory_space<vmem>>, vector<4x256xf32>
    tpu.vector_store %arg7[%c8, %c0_14], %28 {strides = array<i32>} : memref<36x256xf32, #tpu.memory_space<vmem>>, vector<4x256xf32>,
    %c1_i32 = arith.constant 1 : i32
    %30 = tpu.dynamic_rotate %11 by %c1_i32 dim 1 : vector<4x256xf32>, i32 -> vector<4x256xf32>
    %31 = vector.extract_strided_slice %3 {offsets = [3, 0, 0], sizes = [1, 1, 256], strides = [1, 1, 1]} : vector<9x1x256xf32> to vector<1x1x256xf32>
    %32 = vector.shape_cast %31 : vector<1x1x256xf32> to vector<1x256xf32>
    %33 = vector.broadcast %32 : vector<1x256xf32> to vector<4x256xf32>
    %34 = arith.mulf %33, %30 : vector<4x256xf32>
    %c12 = arith.constant 12 : index
    %c0_15 = arith.constant 0 : index
    %35 = vector.load %arg7[%c12, %c0_15] : memref<36x256xf32, #tpu.memory_space<vmem>>, vector<4x256xf32>
    tpu.vector_store %arg7[%c12, %c0_15], %34 {strides = array<i32>} : memref<36x256xf32, #tpu.memory_space<vmem>>, vector<4x256xf32>,
    %36 = vector.extract_strided_slice %3 {offsets = [4, 0, 0], sizes = [1, 1, 256], strides = [1, 1, 1]} : vector<9x1x256xf32> to vector<1x1x256xf32>
    %37 = vector.shape_cast %36 : vector<1x1x256xf32> to vector<1x256xf32>
    %38 = vector.broadcast %37 : vector<1x256xf32> to vector<4x256xf32>
    %39 = arith.mulf %38, %11 : vector<4x256xf32>
    %c16 = arith.constant 16 : index
    %c0_16 = arith.constant 0 : index
    %40 = vector.load %arg7[%c16, %c0_16] : memref<36x256xf32, #tpu.memory_space<vmem>>, vector<4x256xf32>
    tpu.vector_store %arg7[%c16, %c0_16], %39 {strides = array<i32>} : memref<36x256xf32, #tpu.memory_space<vmem>>, vector<4x256xf32>,
    %c255_i32 = arith.constant 255 : i32
    %41 = tpu.dynamic_rotate %11 by %c255_i32 dim 1 : vector<4x256xf32>, i32 -> vector<4x256xf32>
    %42 = vector.extract_strided_slice %3 {offsets = [5, 0, 0], sizes = [1, 1, 256], strides = [1, 1, 1]} : vector<9x1x256xf32> to vector<1x1x256xf32>
    %43 = vector.shape_cast %42 : vector<1x1x256xf32> to vector<1x256xf32>
    %44 = vector.broadcast %43 : vector<1x256xf32> to vector<4x256xf32>
    %45 = arith.mulf %44, %41 : vector<4x256xf32>
    %c20 = arith.constant 20 : index
    %c0_17 = arith.constant 0 : index
    %46 = vector.load %arg7[%c20, %c0_17] : memref<36x256xf32, #tpu.memory_space<vmem>>, vector<4x256xf32>
    tpu.vector_store %arg7[%c20, %c0_17], %45 {strides = array<i32>} : memref<36x256xf32, #tpu.memory_space<vmem>>, vector<4x256xf32>,
    %c241_i32 = arith.constant 241 : i32
    %47 = tpu.dynamic_rotate %11 by %c241_i32 dim 1 : vector<4x256xf32>, i32 -> vector<4x256xf32>
    %48 = vector.extract_strided_slice %3 {offsets = [6, 0, 0], sizes = [1, 1, 256], strides = [1, 1, 1]} : vector<9x1x256xf32> to vector<1x1x256xf32>
    %49 = vector.shape_cast %48 : vector<1x1x256xf32> to vector<1x256xf32>
    %50 = vector.broadcast %49 : vector<1x256xf32> to vector<4x256xf32>
    %51 = arith.mulf %50, %47 : vector<4x256xf32>
    %c24 = arith.constant 24 : index
    %c0_18 = arith.constant 0 : index
    %52 = vector.load %arg7[%c24, %c0_18] : memref<36x256xf32, #tpu.memory_space<vmem>>, vector<4x256xf32>
    tpu.vector_store %arg7[%c24, %c0_18], %51 {strides = array<i32>} : memref<36x256xf32, #tpu.memory_space<vmem>>, vector<4x256xf32>,
    %c240_i32 = arith.constant 240 : i32
    %53 = tpu.dynamic_rotate %11 by %c240_i32 dim 1 : vector<4x256xf32>, i32 -> vector<4x256xf32>
    %54 = vector.extract_strided_slice %3 {offsets = [7, 0, 0], sizes = [1, 1, 256], strides = [1, 1, 1]} : vector<9x1x256xf32> to vector<1x1x256xf32>
    %55 = vector.shape_cast %54 : vector<1x1x256xf32> to vector<1x256xf32>
    %56 = vector.broadcast %55 : vector<1x256xf32> to vector<4x256xf32>
    %57 = arith.mulf %56, %53 : vector<4x256xf32>
    %c28 = arith.constant 28 : index
    %c0_19 = arith.constant 0 : index
    %58 = vector.load %arg7[%c28, %c0_19] : memref<36x256xf32, #tpu.memory_space<vmem>>, vector<4x256xf32>
    tpu.vector_store %arg7[%c28, %c0_19], %57 {strides = array<i32>} : memref<36x256xf32, #tpu.memory_space<vmem>>, vector<4x256xf32>,
    %c239_i32 = arith.constant 239 : i32
    %59 = tpu.dynamic_rotate %11 by %c239_i32 dim 1 : vector<4x256xf32>, i32 -> vector<4x256xf32>
    %60 = vector.extract_strided_slice %3 {offsets = [8, 0, 0], sizes = [1, 1, 256], strides = [1, 1, 1]} : vector<9x1x256xf32> to vector<1x1x256xf32>
    %61 = vector.shape_cast %60 : vector<1x1x256xf32> to vector<1x256xf32>
    %62 = vector.broadcast %61 : vector<1x256xf32> to vector<4x256xf32>
    %63 = arith.mulf %62, %59 : vector<4x256xf32>
    %c32 = arith.constant 32 : index
    %c0_20 = arith.constant 0 : index
    %64 = vector.load %arg7[%c32, %c0_20] : memref<36x256xf32, #tpu.memory_space<vmem>>, vector<4x256xf32>
    tpu.vector_store %arg7[%c32, %c0_20], %63 {strides = array<i32>} : memref<36x256xf32, #tpu.memory_space<vmem>>, vector<4x256xf32>,
    %c0_21 = arith.constant 0 : index
    %c0_22 = arith.constant 0 : index
    %65 = vector.load %arg7[%c0_21, %c0_22] : memref<36x256xf32, #tpu.memory_space<vmem>>, vector<36x256xf32>
    %66 = arith.truncf %65 : vector<36x256xf32> to vector<36x256xbf16>
    %cst_23 = arith.constant dense<0.000000e+00> : vector<8x256xf32>
    %67 = tpu.matmul %2, %66, %cst_23 {dimension_numbers = #tpu.dot_dimension_numbers<[1], [0], [0], [1], [0, 0, 1, 1], [], []>} : vector<8x36xbf16>, vector<36x256xbf16>, vector<8x256xf32> -> vector<8x256xf32>
    %c0_24 = arith.constant 0 : index
    %c0_25 = arith.constant 0 : index
    %c0_26 = arith.constant 0 : index
    %68 = vector.load %arg6[%c0_24, %c0_25, %c0_26] : memref<1x12x256xf32, #tpu.memory_space<vmem>>, vector<1x4x256xf32>
    %69 = vector.shape_cast %68 : vector<1x4x256xf32> to vector<4x256xf32>
    %70 = vector.shape_cast %5 : vector<4x256xf32> to vector<1x4x256xf32>
    tpu.vector_store %arg6[%c0_24, %c0_25, %c0_26], %70 {strides = array<i32>} : memref<1x12x256xf32, #tpu.memory_space<vmem>>, vector<1x4x256xf32>,
    %c0_27 = arith.constant 0 : index
    %c4_28 = arith.constant 4 : index
    %c0_29 = arith.constant 0 : index
    %71 = vector.load %arg6[%c0_27, %c4_28, %c0_29] : memref<1x12x256xf32, #tpu.memory_space<vmem>>, vector<1x8x256xf32>
    %72 = vector.shape_cast %71 : vector<1x8x256xf32> to vector<8x256xf32>
    %73 = vector.shape_cast %67 : vector<8x256xf32> to vector<1x8x256xf32>
    tpu.vector_store %arg6[%c0_27, %c4_28, %c0_29], %73 {strides = array<i32>} : memref<1x12x256xf32, #tpu.memory_space<vmem>>, vector<1x8x256xf32>,
    return
  }
  func.func @transform_0(%arg0: i32) -> (i32, i32, i32) {
    %c0_i32 = arith.constant 0 : i32
    %c0_i32_0 = arith.constant 0 : i32
    %c0_i32_1 = arith.constant 0 : i32
    return %arg0, %c0_i32, %c0_i32_0 : i32, i32, i32
  }
  func.func @transform_1(%arg0: i32) -> (i32, i32) {
    %c0_i32 = arith.constant 0 : i32
    %c0_i32_0 = arith.constant 0 : i32
    %c0_i32_1 = arith.constant 0 : i32
    return %c0_i32, %c0_i32_0 : i32, i32
  }
  func.func @transform_2(%arg0: i32) -> (i32, i32) {
    %c0_i32 = arith.constant 0 : i32
    %c0_i32_0 = arith.constant 0 : i32
    %c0_i32_1 = arith.constant 0 : i32
    return %c0_i32, %c0_i32_0 : i32, i32
  }
  func.func @transform_3(%arg0: i32) -> (i32, i32) {
    %c0_i32 = arith.constant 0 : i32
    %c0_i32_0 = arith.constant 0 : i32
    %c0_i32_1 = arith.constant 0 : i32
    return %c0_i32, %c0_i32_0 : i32, i32
  }
  func.func @transform_4(%arg0: i32) -> (i32, i32, i32) {
    %c0_i32 = arith.constant 0 : i32
    %c0_i32_0 = arith.constant 0 : i32
    %c0_i32_1 = arith.constant 0 : i32
    %c0_i32_2 = arith.constant 0 : i32
    return %c0_i32, %c0_i32_0, %c0_i32_1 : i32, i32, i32
  }
  func.func @transform_5(%arg0: i32) -> (i32, i32, i32) {
    %c0_i32 = arith.constant 0 : i32
    %c0_i32_0 = arith.constant 0 : i32
    %c0_i32_1 = arith.constant 0 : i32
    return %arg0, %c0_i32, %c0_i32_0 : i32, i32, i32
  }
}

</mosaic_0001>

<llo_original>
// kernel: tpu_custom_call.1
$region0: #{tpu_custom_call.1}
  #allocation0 [shape = 'u32[]', space=smem, size = 0x4, offset = 0x4, fixed_abs, tag = 'smem constant byte address 0x4 - core index']
  #allocation1 [shape = 'u32[72,128]{1,0:T(1,128)}', space=vmem, size = 0x9000, scoped, tag = 'internal scratch']
  #allocation2 [shape = 'f32[36,256]{1,0:T(8,128)}', space=vmem, size = 0xa000, scoped, tag = 'scratch operand']
  %s0 = inlined_call_operand.hbm [shape: f32[2,4,256], index: 0, kind: input, shape index: {}]
  %s1 = inlined_call_operand.vmem [shape: bf16[8,36], index: 1, kind: input, shape index: {}]
  %s2 = inlined_call_operand.vmem [shape: f32[4,1], index: 2, kind: input, shape index: {}]
  %s3 = inlined_call_operand.vmem [shape: f32[4,1], index: 3, kind: input, shape index: {}]
  %s4 = inlined_call_operand.hbm [shape: f32[9,1,256], index: 4, kind: input, shape index: {}]
  %s5 = inlined_call_operand.vmem [shape: f32[2,12,256], index: 5, kind: output, shape index: {}]
  %s6 = sld [smem:[#allocation0]]
  $region61: #{tpu_custom_call.1} parent=0
    _
  %s8 = ssub.s32 1, %s6
  %s9 = scalar_select 0, %s8, %s6
  $region1: #{tpu_custom_call.1} parent=0
    #allocation3 [shape = 'u8[8192]{0}', space=vmem, size = 0x2000, scoped, tag = 'input window, operand 0']
    #allocation4 [shape = 's32[2]{0}', space=sflag, size = 0x8, scoped, tag = 'scoped memory for tpu_custom_call.1']
    #allocation5 [shape = 'u8[9216]{0}', space=vmem, size = 0x2400, scoped, tag = 'input window, operand 4, single buffered']
    #allocation6 [shape = 's32[1]{0}', space=sflag, size = 0x4, scoped, tag = 'scoped memory for tpu_custom_call.1']
    %10 = vsyncpa [#allocation4], 0
    %s11 = scalar_lea.sflag [#allocation4], 1
    %12 = vsyncpa %s11, 0
    %13 = vsyncpa [#allocation6], 0
    loop: start=0, step=1, limit=4
    $region2: #{tpu_custom_call.1} parent=1 // loop_pre_header
      _
    $region3: #{tpu_custom_call.1} parent=1 // loop_header
      %s15 = sphi 0, %s19
      %p16 = scmp.ge.s32.totalorder %s15, 4
      %s25 = sphi 0, %s27
      %s28 = sphi 0, %s25
      %s29 = sphi 0, %s28
      %s45 = sphi 0, %s29
      %s49 = sphi 0, %s49
      %s51 = sphi 0, %s49
      %s52 = sphi 0, %s51
      %s66 = sphi 0, %s52
      %s70 = sphi 0, %s70
      %s72 = sphi 0, %s70
      %s73 = sphi 0, %s72
      %s87 = sphi 0, %s73
      %s91 = sphi 0, %s91
      %s93 = sphi 0, %s91
      %s94 = sphi 0, %s93
      %s108 = sphi 0, %s94
      %s112 = sphi 0, %s112
      %s114 = sphi 0, %s112
      %s115 = sphi 0, %s114
      %s129 = sphi 0, %s115
      %s135 = sphi 0, %s137
      %s138 = sphi 0, %s135
      %s139 = sphi 0, %s138
      %s155 = sphi 0, %s139
    $region4: #{tpu_custom_call.1} parent=1 // loop_header_branch
      %18 = sbr.rel (%p16) target = $region8
    $region5: #{tpu_custom_call.1} parent=1 // loop_body
      %s20 = ssub.s32 %s15, 1
      %s21 = ssub.s32 %s15, 2
      %s22 = sadd.s32 %s15, 1
      %s23 = ssub.s32 %s15, %s22
      %p24 = scmp.eq.s32.totalorder %s23, 0
      %s26 = sadd.s32 %s25, 1
      %s27 = scalar_select %p24, %s25, %s26
      %p30 = pneg %p24
      %p31 = scmp.eq.s32.totalorder %s15, 1
      %p32 = por %p30, %p31
      %p33 = scmp.ne.s32.totalorder %s25, %s28
      %p34 = scmp.eq.s32.totalorder %s15, 0
      %p35 = por %p33, %p34
      %p36 = scmp.ne.s32.totalorder %s25, %s28
      %p37 = scmp.eq.s32.totalorder %s20, 1
      %p38 = por %p36, %p37
      %p39 = scmp.ne.s32.totalorder %s28, %s29
      %p40 = scmp.eq.s32.totalorder %s20, 0
      %p41 = por %p39, %p40
      %p42 = scmp.ne.s32.totalorder %s28, %s29
      %p43 = scmp.eq.s32.totalorder %s21, 1
      %p44 = por %p42, %p43
      %p46 = scmp.ne.s32.totalorder %s29, %s45
      %p47 = scmp.eq.s32.totalorder %s21, 0
      %p48 = por %p46, %p47
      %s50 = sadd.s32 %s49, 1
      %p53 = scmp.eq.s32.totalorder %s15, 1
      %p54 = scmp.ne.s32.totalorder %s49, %s51
      %p55 = scmp.eq.s32.totalorder %s15, 0
      %p56 = por %p54, %p55
      %p57 = scmp.ne.s32.totalorder %s49, %s51
      %p58 = scmp.eq.s32.totalorder %s20, 1
      %p59 = por %p57, %p58
      %p60 = scmp.ne.s32.totalorder %s51, %s52
      %p61 = scmp.eq.s32.totalorder %s20, 0
      %p62 = por %p60, %p61
      %p63 = scmp.ne.s32.totalorder %s51, %s52
      %p64 = scmp.eq.s32.totalorder %s21, 1
      %p65 = por %p63, %p64
      %p67 = scmp.ne.s32.totalorder %s52, %s66
      %p68 = scmp.eq.s32.totalorder %s21, 0
      %p69 = por %p67, %p68
      %s71 = sadd.s32 %s70, 1
      %p74 = scmp.eq.s32.totalorder %s15, 1
      %p75 = scmp.ne.s32.totalorder %s70, %s72
      %p76 = scmp.eq.s32.totalorder %s15, 0
      %p77 = por %p75, %p76
      %p78 = scmp.ne.s32.totalorder %s70, %s72
      %p79 = scmp.eq.s32.totalorder %s20, 1
      %p80 = por %p78, %p79
      %p81 = scmp.ne.s32.totalorder %s72, %s73
      %p82 = scmp.eq.s32.totalorder %s20, 0
      %p83 = por %p81, %p82
      %p84 = scmp.ne.s32.totalorder %s72, %s73
      %p85 = scmp.eq.s32.totalorder %s21, 1
      %p86 = por %p84, %p85
      %p88 = scmp.ne.s32.totalorder %s73, %s87
      %p89 = scmp.eq.s32.totalorder %s21, 0
      %p90 = por %p88, %p89
      %s92 = sadd.s32 %s91, 1
      %p95 = scmp.eq.s32.totalorder %s15, 1
      %p96 = scmp.ne.s32.totalorder %s91, %s93
      %p97 = scmp.eq.s32.totalorder %s15, 0
      %p98 = por %p96, %p97
      %p99 = scmp.ne.s32.totalorder %s91, %s93
      %p100 = scmp.eq.s32.totalorder %s20, 1
      %p101 = por %p99, %p100
      %p102 = scmp.ne.s32.totalorder %s93, %s94
      %p103 = scmp.eq.s32.totalorder %s20, 0
      %p104 = por %p102, %p103
      %p105 = scmp.ne.s32.totalorder %s93, %s94
      %p106 = scmp.eq.s32.totalorder %s21, 1
      %p107 = por %p105, %p106
      %p109 = scmp.ne.s32.totalorder %s94, %s108
      %p110 = scmp.eq.s32.totalorder %s21, 0
      %p111 = por %p109, %p110
      %s113 = sadd.s32 %s112, 1
      %p116 = scmp.eq.s32.totalorder %s15, 1
      %p117 = scmp.ne.s32.totalorder %s112, %s114
      %p118 = scmp.eq.s32.totalorder %s15, 0
      %p119 = por %p117, %p118
      %p120 = scmp.ne.s32.totalorder %s112, %s114
      %p121 = scmp.eq.s32.totalorder %s20, 1
      %p122 = por %p120, %p121
      %p123 = scmp.ne.s32.totalorder %s114, %s115
      %p124 = scmp.eq.s32.totalorder %s20, 0
      %p125 = por %p123, %p124
      %p126 = scmp.ne.s32.totalorder %s114, %s115
      %p127 = scmp.eq.s32.totalorder %s21, 1
      %p128 = por %p126, %p127
      %p130 = scmp.ne.s32.totalorder %s115, %s129
      %p131 = scmp.eq.s32.totalorder %s21, 0
      %p132 = por %p130, %p131
      %s133 = ssub.s32 %s15, %s22
      %p134 = scmp.eq.s32.totalorder %s133, 0
      %s136 = sadd.s32 %s135, 1
      %s137 = scalar_select %p134, %s135, %s136
      %p140 = pneg %p134
      %p141 = scmp.eq.s32.totalorder %s15, 1
      %p142 = por %p140, %p141
      %p143 = scmp.ne.s32.totalorder %s135, %s138
      %p144 = scmp.eq.s32.totalorder %s15, 0
      %p145 = por %p143, %p144
      %p146 = scmp.ne.s32.totalorder %s135, %s138
      %p147 = scmp.eq.s32.totalorder %s20, 1
      %p148 = por %p146, %p147
      %p149 = scmp.ne.s32.totalorder %s138, %s139
      %p150 = scmp.eq.s32.totalorder %s20, 0
      %p151 = por %p149, %p150
      %p152 = scmp.ne.s32.totalorder %s138, %s139
      %p153 = scmp.eq.s32.totalorder %s21, 1
      %p154 = por %p152, %p153
      %p156 = scmp.ne.s32.totalorder %s139, %s155
      %p157 = scmp.eq.s32.totalorder %s21, 0
      %p158 = por %p156, %p157
      %p159 = scmp.le.s32.totalorder 1, %s15
      %p160 = scmp.lt.s32.totalorder %s15, 3
      %p161 = pnand %p159, %p160
      %p162 = pneg %p161
      // Predicated region
      $region9: #{tpu_custom_call.1} parent=5 // pred_check
        _
      $region10: #{tpu_custom_call.1} parent=5 // pred_check_branch
        %164 = sbr.rel (%p161) target = $region12
      $region11: #{tpu_custom_call.1} parent=5 // pred_region
        %s165 = ssub.s32 %s15, 1
        // Predicated region
        $region13: #{tpu_custom_call.1} parent=11 // pred_check
          %p166 = pneg %p62
        $region14: #{tpu_custom_call.1} parent=11 // pred_check_branch
          %168 = sbr.rel (%p166) target = $region16
        $region15: #{tpu_custom_call.1} parent=11 // pred_region
          _
        $region16: #{tpu_custom_call.1} parent=11 // pred_fallthru
          _
        // Predicated region
        $region17: #{tpu_custom_call.1} parent=11 // pred_check
          %p169 = pneg %p83
        $region18: #{tpu_custom_call.1} parent=11 // pred_check_branch
          %171 = sbr.rel (%p169) target = $region20
        $region19: #{tpu_custom_call.1} parent=11 // pred_region
          _
        $region20: #{tpu_custom_call.1} parent=11 // pred_fallthru
          _
        // Predicated region
        $region21: #{tpu_custom_call.1} parent=11 // pred_check
          %p172 = pneg %p104
        $region22: #{tpu_custom_call.1} parent=11 // pred_check_branch
          %174 = sbr.rel (%p172) target = $region24
        $region23: #{tpu_custom_call.1} parent=11 // pred_region
          _
        $region24: #{tpu_custom_call.1} parent=11 // pred_fallthru
          _
        // Predicated region
        $region25: #{tpu_custom_call.1} parent=11 // pred_check
          %p175 = pneg %p125
        $region26: #{tpu_custom_call.1} parent=11 // pred_check_branch
          %177 = sbr.rel (%p175) target = $region28
        $region27: #{tpu_custom_call.1} parent=11 // pred_region
          %179 = vsyncadd [#allocation6], 0
          %s180 = sshll.u32 %s4, 4
          %s181 = int_to_ptr.hbm [resolvable:$true] %s180
          %s182 = sshll.u32 [#allocation5], 4
          %s183 = int_to_ptr.vmem [resolvable:$true] %s182
          %188 = dma.hbm_to_vmem [thread:$0]  %s181, 288, %s183, [#allocation6], 32, 32, 2
        $region28: #{tpu_custom_call.1} parent=11 // pred_fallthru
          _
      $region12: #{tpu_custom_call.1} parent=5 // pred_fallthru
        _
      %p189 = scmp.lt.s32.totalorder %s15, 2
      // Predicated region
      $region29: #{tpu_custom_call.1} parent=5 // pred_check
        %p190 = pneg %p189
      $region30: #{tpu_custom_call.1} parent=5 // pred_check_branch
        %192 = sbr.rel (%p190) target = $region32
      $region31: #{tpu_custom_call.1} parent=5 // pred_region
        // Predicated region
        $region33: #{tpu_custom_call.1} parent=31 // pred_check
          %p193 = pneg %p35
        $region34: #{tpu_custom_call.1} parent=31 // pred_check_branch
          %195 = sbr.rel (%p193) target = $region36
        $region35: #{tpu_custom_call.1} parent=31 // pred_region
          %s196 = sand.u32 %s25, 1
          %s197 = scalar_lea.sflag [#allocation4], %s196
          %s198 = sand.u32 %s25, 1
          %s199 = smul.addr %s198, 8
          %s200 = scalar_lea.vmem [#allocation3], %s199
          %202 = vsyncadd %s197, 0
          %s203 = smul.addr %s15, 2
          %s204 = smul.addr %s203, 4
          %s205 = scalar_lea.hbm %s0, %s204
          %s207 = sshll.u32 %s205, 4
          %s208 = int_to_ptr.hbm [resolvable:$true] %s207
          %s209 = sshll.u32 %s200, 4
          %s210 = int_to_ptr.vmem [resolvable:$true] %s209
          %212 = dma.hbm_to_vmem [thread:$0]  %s208, 128, %s210, %s197
        $region36: #{tpu_custom_call.1} parent=31 // pred_fallthru
          _
      $region32: #{tpu_custom_call.1} parent=5 // pred_fallthru
        _
      %p213 = scmp.le.s32.totalorder 1, %s15
      %p214 = scmp.lt.s32.totalorder %s15, 3
      %p215 = pnand %p213, %p214
      %p216 = pneg %p215
      // Predicated region
      $region37: #{tpu_custom_call.1} parent=5 // pred_check
        _
      $region38: #{tpu_custom_call.1} parent=5 // pred_check_branch
        %218 = sbr.rel (%p215) target = $region40
      $region39: #{tpu_custom_call.1} parent=5 // pred_region
        %s219 = ssub.s32 %s15, 1
        %s220 = sand.u32 %s28, 1
        %s221 = scalar_lea.sflag [#allocation4], %s220
        %s222 = sand.u32 %s28, 1
        %s223 = smul.addr %s222, 8
        %s224 = scalar_lea.vmem [#allocation3], %s223
        // Predicated region
        $region41: #{tpu_custom_call.1} parent=39 // pred_check
          %p225 = pneg %p41
        $region42: #{tpu_custom_call.1} parent=39 // pred_check_branch
          %227 = sbr.rel (%p225) target = $region44
        $region43: #{tpu_custom_call.1} parent=39 // pred_region
          %229 = dma.done %s221, 128
        $region44: #{tpu_custom_call.1} parent=39 // pred_fallthru
          _
        // Predicated region
        $region45: #{tpu_custom_call.1} parent=39 // pred_check
          %p230 = pneg %p125
        $region46: #{tpu_custom_call.1} parent=39 // pred_check_branch
          %232 = sbr.rel (%p230) target = $region48
        $region47: #{tpu_custom_call.1} parent=39 // pred_region
          %234 = dma.done [#allocation6], 288
        $region48: #{tpu_custom_call.1} parent=39 // pred_fallthru
          _
        %s235 = sand.u32 %s28, 1
        %s236 = scalar_lea.sflag [#allocation4], %s235
        %s237 = sand.u32 %s28, 1
        %s238 = smul.addr %s237, 8
        %s239 = scalar_lea.vmem [#allocation3], %s238
        %p240 = pneg %p41
        %p241 = pneg %p38
        %p242 = pneg %p62
        %p243 = pneg %p59
        %p244 = pneg %p83
        %p245 = pneg %p80
        %p246 = pneg %p104
        %p247 = pneg %p101
        %p248 = pneg %p125
        %p249 = pneg %p122
        %p250 = pneg %p151
        %p251 = pneg %p148
        %p252 = scmp.lt.s32.totalorder %s20, 1
        %s253 = scalar_select %p252, %s20, 1
        %s254 = smul.addr %s253, 4
        %s255 = smul.addr %s254, 8
        %s256 = scalar_lea.vmem %s5, %s255
        %p257 = scmp.lt.s32.totalorder %s20, 1
        %s258 = scalar_select %p257, %s20, 1
        %s259 = smul.addr %s258, 4
        %s260 = smul.addr %s259, 8
        %s261 = scalar_lea.vmem %s5, %s260
        %v263 = vld [vmem:[%s2] sm:$0xf]
        %v264 = vld [vmem:[%s3] sm:$0xf]
        %v265 = vld [vmem:[%s1] sm:$0xf]
        %v266 = vld [vmem:[#allocation5] sm:$0x3]
        %v267 = vld [vmem:[#allocation5 + $0x2] sm:$0x3]
        %v268 = vld [vmem:[#allocation5 + $0x4] sm:$0x3]
        %v269 = vld [vmem:[#allocation5 + $0x6] sm:$0x3]
        %v270 = vld [vmem:[#allocation5 + $0x8] sm:$0x3]
        %v271 = vld [vmem:[#allocation5 + $0xa] sm:$0x3]
        %v272 = vld [vmem:[#allocation5 + $0xc] sm:$0x3]
        %v273 = vld [vmem:[#allocation5 + $0xe] sm:$0x3]
        %v274 = vld [vmem:[#allocation5 + $0x10] sm:$0x3]
        %v275 = vld [vmem:[%s224] sm:$0xff]
        %277 = vset.pattern.permute.xlu0 0
        %278 = vperm.xlu0 %277, %v263
        %v279 = vpop.permute.xlu0 %278
        %v281 = vunpack.c.l.s4 839922192
        %v282 = vunpack.c.0.s8 %v281
        %v283 = vperm.slane %v279, %v282
        %v285 = vmul.f32 %v275, %v283
        %287 = vset.pattern.permute.xlu0 0
        %288 = vperm.xlu0 %287, %v264
        %v289 = vpop.permute.xlu0 %288
        %v291 = vunpack.c.l.s4 839922192
        %v292 = vunpack.c.0.s8 %v291
        %v293 = vperm.slane %v289, %v292
        %v295 = vadd.f32 %v285, %v293
        %v296 = vmax.f32 %v295, 0.0
        %298 = vst [vmem:[#allocation1] ss:$2 sm:$0xff] %v296
        %v299 = vld.sshfl [vmem:[#allocation1] sm:$0xff pattern:$0x75316420]
        %v300 = vld.sshfl [vmem:[#allocation1 + $0x8] sm:$0xff pattern:$0x75316420]
        %303 = vrot.lane.b32.xlu0 %v299, 17
        %v304 = vpop.permute.xlu0 %303
        %305 = vrot.lane.b32.xlu0 %v300, 17
        %v306 = vpop.permute.xlu0 %305
        %v307 = vlaneseq
        %v308 = vand.u32 %v307, 127
        %vm309 = vcmp.lt.s32.totalorder %v308, 17
        %v310 = vsel %vm309, %v304, %v306
        %v311 = vsel %vm309, %v306, %v304
        %v313 = vperm.slane %v266, 0
        %v314 = vperm.slane %v266, 1
        %v317 = vmul.f32 %v313, %v311
        %v318 = vmul.f32 %v314, %v310
        %319 = vst [vmem:[#allocation2] sm:$0xf] %v317
        %320 = vst [vmem:[#allocation2 + $0x8] sm:$0xf] %v318
        %321 = vst [vmem:[#allocation1] ss:$2 sm:$0xff] %v296
        %v322 = vld.sshfl [vmem:[#allocation1] sm:$0xff pattern:$0x75316420]
        %v323 = vld.sshfl [vmem:[#allocation1 + $0x8] sm:$0xff pattern:$0x75316420]
        %326 = vrot.lane.b32.xlu0 %v322, 16
        %v327 = vpop.permute.xlu0 %326
        %328 = vrot.lane.b32.xlu0 %v323, 16
        %v329 = vpop.permute.xlu0 %328
        %vm330 = vcmp.lt.s32.totalorder %v308, 16
        %v331 = vsel %vm330, %v327, %v329
        %v332 = vsel %vm330, %v329, %v327
        %v334 = vperm.slane %v267, 0
        %v335 = vperm.slane %v267, 1
        %v338 = vmul.f32 %v334, %v332
        %v339 = vmul.f32 %v335, %v331
        %v342 = vrot.slane %v338, 4
        %v343 = vrot.slane %v339, 4
        %346 = vst [vmem:[#allocation2] sm:$0xf0] %v342
        %347 = vst [vmem:[#allocation2 + $0x8] sm:$0xf0] %v343
        %348 = vst [vmem:[#allocation1] ss:$2 sm:$0xff] %v296
        %v349 = vld.sshfl [vmem:[#allocation1] sm:$0xff pattern:$0x75316420]
        %v350 = vld.sshfl [vmem:[#allocation1 + $0x8] sm:$0xff pattern:$0x75316420]
        %353 = vrot.lane.b32.xlu0 %v349, 15
        %v354 = vpop.permute.xlu0 %353
        %355 = vrot.lane.b32.xlu0 %v350, 15
        %v356 = vpop.permute.xlu0 %355
        %vm357 = vcmp.lt.s32.totalorder %v308, 15
        %v358 = vsel %vm357, %v354, %v356
        %v359 = vsel %vm357, %v356, %v354
        %v361 = vperm.slane %v268, 0
        %v362 = vperm.slane %v268, 1
        %v365 = vmul.f32 %v361, %v359
        %v366 = vmul.f32 %v362, %v358
        %367 = vst [vmem:[#allocation2 + $0x10] sm:$0xf] %v365
        %368 = vst [vmem:[#allocation2 + $0x18] sm:$0xf] %v366
        %369 = vst [vmem:[#allocation1] ss:$2 sm:$0xff] %v296
        %v370 = vld.sshfl [vmem:[#allocation1] sm:$0xff pattern:$0x75316420]
        %v371 = vld.sshfl [vmem:[#allocation1 + $0x8] sm:$0xff pattern:$0x75316420]
        %374 = vrot.lane.b32.xlu0 %v370, 1
        %v375 = vpop.permute.xlu0 %374
        %376 = vrot.lane.b32.xlu0 %v371, 1
        %v377 = vpop.permute.xlu0 %376
        %vm378 = vcmp.lt.s32.totalorder %v308, 1
        %v379 = vsel %vm378, %v375, %v377
        %v380 = vsel %vm378, %v377, %v375
        %v382 = vperm.slane %v269, 0
        %v383 = vperm.slane %v269, 1
        %v386 = vmul.f32 %v382, %v380
        %v387 = vmul.f32 %v383, %v379
        %v390 = vrot.slane %v386, 4
        %v391 = vrot.slane %v387, 4
        %394 = vst [vmem:[#allocation2 + $0x10] sm:$0xf0] %v390
        %395 = vst [vmem:[#allocation2 + $0x18] sm:$0xf0] %v391
        %v397 = vperm.slane %v270, 0
        %v398 = vperm.slane %v270, 1
        %401 = vst [vmem:[#allocation1] ss:$2 sm:$0xff] %v296
        %v402 = vld.sshfl [vmem:[#allocation1] sm:$0xff pattern:$0x75316420]
        %v403 = vld.sshfl [vmem:[#allocation1 + $0x8] sm:$0xff pattern:$0x75316420]
        %v406 = vmul.f32 %v397, %v402
        %v407 = vmul.f32 %v398, %v403
        %408 = vst [vmem:[#allocation2 + $0x20] sm:$0xf] %v406
        %409 = vst [vmem:[#allocation2 + $0x28] sm:$0xf] %v407
        %410 = vst [vmem:[#allocation1] ss:$2 sm:$0xff] %v296
        %v411 = vld.sshfl [vmem:[#allocation1] sm:$0xff pattern:$0x75316420]
        %v412 = vld.sshfl [vmem:[#allocation1 + $0x8] sm:$0xff pattern:$0x75316420]
        %415 = vrot.lane.b32.xlu0 %v411, 127
        %v416 = vpop.permute.xlu0 %415
        %417 = vrot.lane.b32.xlu0 %v412, 127
        %v418 = vpop.permute.xlu0 %417
        %vm419 = vcmp.lt.s32.totalorder %v308, 127
        %v420 = vsel %vm419, %v416, %v418
        %v421 = vsel %vm419, %v418, %v416
        %v423 = vperm.slane %v271, 0
        %v424 = vperm.slane %v271, 1
        %v427 = vmul.f32 %v423, %v420
        %v428 = vmul.f32 %v424, %v421
        %v431 = vrot.slane %v427, 4
        %v432 = vrot.slane %v428, 4
        %435 = vst [vmem:[#allocation2 + $0x20] sm:$0xf0] %v431
        %436 = vst [vmem:[#allocation2 + $0x28] sm:$0xf0] %v432
        %437 = vst [vmem:[#allocation1] ss:$2 sm:$0xff] %v296
        %v438 = vld.sshfl [vmem:[#allocation1] sm:$0xff pattern:$0x75316420]
        %v439 = vld.sshfl [vmem:[#allocation1 + $0x8] sm:$0xff pattern:$0x75316420]
        %442 = vrot.lane.b32.xlu0 %v438, 113
        %v443 = vpop.permute.xlu0 %442
        %444 = vrot.lane.b32.xlu0 %v439, 113
        %v445 = vpop.permute.xlu0 %444
        %vm446 = vcmp.lt.s32.totalorder %v308, 113
        %v447 = vsel %vm446, %v443, %v445
        %v448 = vsel %vm446, %v445, %v443
        %v450 = vperm.slane %v272, 0
        %v451 = vperm.slane %v272, 1
        %v454 = vmul.f32 %v450, %v447
        %v455 = vmul.f32 %v451, %v448
        %456 = vst [vmem:[#allocation2 + $0x30] sm:$0xf] %v454
        %457 = vst [vmem:[#allocation2 + $0x38] sm:$0xf] %v455
        %458 = vst [vmem:[#allocation1] ss:$2 sm:$0xff] %v296
        %v459 = vld.sshfl [vmem:[#allocation1] sm:$0xff pattern:$0x75316420]
        %v460 = vld.sshfl [vmem:[#allocation1 + $0x8] sm:$0xff pattern:$0x75316420]
        %463 = vrot.lane.b32.xlu0 %v459, 112
        %v464 = vpop.permute.xlu0 %463
        %465 = vrot.lane.b32.xlu0 %v460, 112
        %v466 = vpop.permute.xlu0 %465
        %vm467 = vcmp.lt.s32.totalorder %v308, 112
        %v468 = vsel %vm467, %v464, %v466
        %v469 = vsel %vm467, %v466, %v464
        %v471 = vperm.slane %v273, 0
        %v472 = vperm.slane %v273, 1
        %v475 = vmul.f32 %v471, %v468
        %v476 = vmul.f32 %v472, %v469
        %v479 = vrot.slane %v475, 4
        %v480 = vrot.slane %v476, 4
        %483 = vst [vmem:[#allocation2 + $0x30] sm:$0xf0] %v479
        %484 = vst [vmem:[#allocation2 + $0x38] sm:$0xf0] %v480
        %485 = vst [vmem:[#allocation1] ss:$2 sm:$0xff] %v296
        %v486 = vld.sshfl [vmem:[#allocation1] sm:$0xff pattern:$0x75316420]
        %v487 = vld.sshfl [vmem:[#allocation1 + $0x8] sm:$0xff pattern:$0x75316420]
        %490 = vrot.lane.b32.xlu0 %v486, 111
        %v491 = vpop.permute.xlu0 %490
        %492 = vrot.lane.b32.xlu0 %v487, 111
        %v493 = vpop.permute.xlu0 %492
        %vm494 = vcmp.lt.s32.totalorder %v308, 111
        %v495 = vsel %vm494, %v491, %v493
        %v496 = vsel %vm494, %v493, %v491
        %v498 = vperm.slane %v274, 0
        %v499 = vperm.slane %v274, 1
        %v502 = vmul.f32 %v498, %v495
        %v503 = vmul.f32 %v499, %v496
        %504 = vst [vmem:[#allocation2 + $0x40] sm:$0xf] %v502
        %505 = vst [vmem:[#allocation2 + $0x48] sm:$0xf] %v503
        %v506 = vld [vmem:[#allocation2] sm:$0xff]
        %v507 = vld [vmem:[#allocation2 + $0x8] sm:$0xff]
        %v508 = vld [vmem:[#allocation2 + $0x10] sm:$0xff]
        %v509 = vld [vmem:[#allocation2 + $0x18] sm:$0xff]
        %v510 = vld [vmem:[#allocation2 + $0x20] sm:$0xff]
        %v511 = vld [vmem:[#allocation2 + $0x28] sm:$0xff]
        %v512 = vld [vmem:[#allocation2 + $0x30] sm:$0xff]
        %v513 = vld [vmem:[#allocation2 + $0x38] sm:$0xff]
        %v514 = vld [vmem:[#allocation2 + $0x40] sm:$0xf]
        %v515 = vld [vmem:[#allocation2 + $0x48] sm:$0xf]
        %v516 = vpack.c.bf16 %v508, %v506
        %v517 = vpack.c.bf16 %v509, %v507
        %v518 = vpack.c.bf16 %v512, %v510
        %v519 = vpack.c.bf16 %v513, %v511
        %v520 = vpack.c.bf16 %v514, %v514
        %v521 = vpack.c.bf16 %v515, %v515
        %vm522 = vcmask 293888
        %v524 = vsel %vm522, %v265, 0
        %vm526 = vcmask 1041408
        %v528 = vsel %vm526, %v520, 0
        %v531 = vsel %vm526, %v521, 0
        %533 = vmatpush.bf16.msra.mxu0 0
        %534 = vmatpush.bf16.msra.mxu0 0
        %535 = vmatpush.bf16.msra.mxu0 0
        %536 = vmatpush.bf16.msra.mxu0 0
        %537 = vmatpush.bf16.msra.mxu0 0
        %538 = vmatpush.bf16.msra.mxu0 %v528
        %539 = vmatpush.bf16.msra.mxu0 %v518
        %540 = vmatpush.bf16.msra.mxu0 %v516
        %541 = vmatmul.bf16.gmra.mxu0 %v524
        %v542 = vpop.f32.mrf.mxu0
        %v543 = vadd.f32 0.0, %v542
        %v544 = vpop.f32.mrf.mxu0
        %545 = vdwg.mxu0
        %546 = vmatpush.bf16.msra.mxu0 0
        %547 = vmatpush.bf16.msra.mxu0 0
        %548 = vmatpush.bf16.msra.mxu0 0
        %549 = vmatpush.bf16.msra.mxu0 0
        %550 = vmatpush.bf16.msra.mxu0 0
        %551 = vmatpush.bf16.msra.mxu0 %v531
        %552 = vmatpush.bf16.msra.mxu0 %v519
        %553 = vmatpush.bf16.msra.mxu0 %v517
        %554 = vmatmul.bf16.gmra.mxu0 %v524
        %v555 = vpop.f32.mrf.mxu0
        %v556 = vadd.f32 0.0, %v555
        %v557 = vpop.f32.mrf.mxu0
        %558 = vdwg.mxu0
        %560 = vst [vmem:[#allocation1] ss:$2 sm:$0xff] %v275
        %v561 = vld.sshfl [vmem:[#allocation1] sm:$0xff pattern:$0x75316420]
        %v562 = vld.sshfl [vmem:[#allocation1 + $0x8] sm:$0xff pattern:$0x75316420]
        %565 = vst [vmem:[%s261] sm:$0xf] %v561
        %566 = vst [vmem:[%s261 + $0x8] sm:$0xf] %v562
        %v569 = vrot.slane %v543, 4
        %v570 = vrot.slane %v556, 4
        %573 = vst [vmem:[%s261] sm:$0xf0] %v569
        %574 = vst [vmem:[%s261 + $0x8] sm:$0xf0] %v570
        %575 = vst [vmem:[%s261 + $0x10] sm:$0xf] %v569
        %576 = vst [vmem:[%s261 + $0x18] sm:$0xf] %v570
        %p577 = scmp.lt.s32.totalorder %s20, 1
        %s578 = scalar_select %p577, %s20, 1
        %s579 = smul.addr %s578, 4
        %s580 = smul.addr %s579, 8
        %s581 = scalar_lea.vmem %s5, %s580
        // Predicated region
        $region49: #{tpu_custom_call.1} parent=39 // pred_check
          %p582 = pneg %p148
        $region50: #{tpu_custom_call.1} parent=39 // pred_check_branch
          %584 = sbr.rel (%p582) target = $region52
        $region51: #{tpu_custom_call.1} parent=39 // pred_region
          _
        $region52: #{tpu_custom_call.1} parent=39 // pred_fallthru
          _
      $region40: #{tpu_custom_call.1} parent=5 // pred_fallthru
        _
      %p585 = scmp.le.s32.totalorder 2, %s15
      // Predicated region
      $region53: #{tpu_custom_call.1} parent=5 // pred_check
        %p586 = pneg %p585
      $region54: #{tpu_custom_call.1} parent=5 // pred_check_branch
        %588 = sbr.rel (%p586) target = $region56
      $region55: #{tpu_custom_call.1} parent=5 // pred_region
        %s589 = ssub.s32 %s15, 2
        // Predicated region
        $region57: #{tpu_custom_call.1} parent=55 // pred_check
          %p590 = pneg %p154
        $region58: #{tpu_custom_call.1} parent=55 // pred_check_branch
          %592 = sbr.rel (%p590) target = $region60
        $region59: #{tpu_custom_call.1} parent=55 // pred_region
          %p593 = scmp.lt.s32.totalorder %s21, 1
          %s594 = scalar_select %p593, %s21, 1
          %s595 = smul.addr %s594, 4
          %s596 = smul.addr %s595, 8
          %s597 = scalar_lea.vmem %s5, %s596
        $region60: #{tpu_custom_call.1} parent=55 // pred_fallthru
          _
      $region56: #{tpu_custom_call.1} parent=5 // pred_fallthru
        _
    $region6: #{tpu_custom_call.1} parent=1 // loop_footer
      %s19 = sadd.s32 1, %s15
    $region7: #{tpu_custom_call.1} parent=1 // loop_footer_branch
      %14 = sbr.rel target = $region3
    $region8: #{tpu_custom_call.1} parent=1 // loop_exit
      _
    %598 = vsyncpa [#allocation4], 1
    %s599 = scalar_lea.sflag [#allocation4], 1
    %600 = vsyncpa %s599, 1
    %601 = vsyncpa [#allocation6], 1

</llo_original>
